<compile_context>
chip_gen: v6e
topology: v6e:2x2x1
jax: 0.10.0
libtpu: 0.0.40
codegen_flags: <defaults>
</compile_context>

<pallas_src>
import functools
import inspect

import jax
import jax.numpy as jnp
from jax.experimental import pallas as pl
from jax.experimental.pallas import tpu as pltpu


# ---------------------------------------------------------------------------
# Kernel 1: packed QKV projection
# ---------------------------------------------------------------------------

def _qkv_proj_kernel(x_ref, wqkv_ref, q_ref, k_ref, v_ref, *, scale):
    # x_ref:    (1, Tl, C)   input rows for one (batch, L-tile)
    # wqkv_ref: (C, 3C)      [wq.T | wk.T | wv.T]   (pre-packed in wrapper)
    x = x_ref[0]                                                  # (Tl, C), input dtype
    C = x.shape[-1]
    # qkv_bias=False -> no bias add.  Input-dtype operands, f32 accumulation.
    qkv = jnp.dot(x, wqkv_ref[...], preferred_element_type=jnp.float32)   # (Tl, 3C)
    # Fold the softmax scale into q here (Tl*C multiplies instead of Tq*Tk later).
    q_ref[0] = (qkv[:, 0 * C:1 * C] * jnp.float32(scale)).astype(q_ref.dtype)
    k_ref[0] = qkv[:, 1 * C:2 * C].astype(k_ref.dtype)
    v_ref[0] = qkv[:, 2 * C:3 * C].astype(v_ref.dtype)


# ---------------------------------------------------------------------------
# Kernel 2: flash (online-softmax) attention + fused output projection
# ---------------------------------------------------------------------------

def _flash_attn_proj_kernel(q_ref, k_ref, v_ref, wo_ref, bo_ref, o_ref,
                            m_ref, l_ref, acc_ref, *, num_heads):
    # q_ref: (1, Tq, C)  scaled queries     k_ref/v_ref: (1, Tk, C)
    # wo_ref: (C, C) = proj.weight.T        bo_ref: (1, C)
    # o_ref: (1, Tq, C)
    # m_ref/l_ref: (H, Tq, 1) f32           acc_ref: (H, Tq, D) f32
    ki = pl.program_id(2)

    @pl.when(ki == 0)
    def _init():
        m_ref[...] = jnp.full(m_ref.shape, -jnp.inf, dtype=m_ref.dtype)
        l_ref[...] = jnp.zeros(l_ref.shape, dtype=l_ref.dtype)
        acc_ref[...] = jnp.zeros(acc_ref.shape, dtype=acc_ref.dtype)

    q = q_ref[0]                       # (Tq, C), input dtype (scale already folded)
    k = k_ref[0]                       # (Tk, C)
    v = v_ref[0]                       # (Tk, C)
    Tq, C = q.shape
    D = C // num_heads

    for h in range(num_heads):         # statically unrolled per-head loop
        qh = q[:, h * D:(h + 1) * D]   # (Tq, D)
        kh = k[:, h * D:(h + 1) * D]   # (Tk, D)
        vh = v[:, h * D:(h + 1) * D]   # (Tk, D)
        # q @ k^T contracting on D; input-dtype operands, f32 MXU accumulation.
        # TODO(synk): if the bundle dump shows a per-head vxpose here, stage K
        #             in (D, Tk) orientation from the projection kernel instead.
        s = jax.lax.dot_general(qh, kh, (((1,), (1,)), ((), ())),
                                preferred_element_type=jnp.float32)       # (Tq, Tk)

        m_prev = m_ref[h]                                                  # (Tq, 1)
        m_new = jnp.maximum(m_prev, jnp.max(s, axis=-1, keepdims=True))
        alpha = jnp.exp(m_prev - m_new)                                    # f32
        p = jnp.exp(s - m_new)                                             # f32 softmax math
        l_ref[h] = alpha * l_ref[h] + jnp.sum(p, axis=-1, keepdims=True)
        acc_ref[h] = alpha * acc_ref[h] + jnp.dot(
            p.astype(v.dtype), vh, preferred_element_type=jnp.float32)
        m_ref[h] = m_new

    @pl.when(ki == pl.num_programs(2) - 1)
    def _finalize():
        wo = wo_ref[...]                                                   # (C, C)
        out = jnp.zeros((Tq, C), dtype=jnp.float32)
        for h in range(num_heads):
            # approx reciprocal runs on the EUP slot (~free); ~1e-3 row-sum error.
            normed = acc_ref[h] * pl.reciprocal(l_ref[h], approx=True)     # (Tq, D)
            out = out + jnp.dot(normed.astype(wo.dtype),
                                wo[h * D:(h + 1) * D, :],
                                preferred_element_type=jnp.float32)
        out = out + bo_ref[...].astype(jnp.float32)
        o_ref[0] = out.astype(o_ref.dtype)


# ---------------------------------------------------------------------------
# Wrapper
# ---------------------------------------------------------------------------

def _pick_tile(n, target=256):
    """Largest tile <= target that divides n and is sublane-aligned (mult of 8)."""
    if n <= target:
        return n
    for t in range(target, 7, -1):
        if n % t == 0 and t % 8 == 0:
            return t
    return n   # fall back to the full dimension (always layout-legal)


def _resident_spec(block_shape):
    """BlockSpec for a grid-invariant operand; single-buffered when supported."""
    index_map = lambda *_: (0,) * len(block_shape)
    try:
        if hasattr(pl, "Buffered") and \
                "pipeline_mode" in inspect.signature(pl.BlockSpec).parameters:
            return pl.BlockSpec(block_shape, index_map,
                                pipeline_mode=pl.Buffered(1))
    except (TypeError, ValueError):
        pass
    return pl.BlockSpec(block_shape, index_map)


def _vmem_limit(estimate_bytes):
    # 2x margin, floor 32 MiB, cap 64 MiB (safe on v5e/v6e/v7x scoped budgets).
    return int(min(max(2 * estimate_bytes, 32 * 1024 * 1024), 64 * 1024 * 1024))


def attention_forward(x, params, num_heads, *, context=None, context_mask=None,
                      rope_mode="none", qk_norm=None, attn_drop=0.0,
                      proj_drop=0.0, q_tile=256, kv_tile=256):
    """Forward pass of the Attention module (default config only)."""
    # Non-default configs fail loudly rather than silently computing the wrong thing.
    assert context is None and context_mask is None, "cross-attn/mask not implemented"
    assert rope_mode == "none" and qk_norm is None, "rope/qk_norm not implemented"
    assert attn_drop == 0.0 and proj_drop == 0.0, "dropout not implemented"

    B, L, C = x.shape
    assert C % num_heads == 0
    D = C // num_heads
    scale = D ** (-0.5)
    dtype = x.dtype
    isz = x.dtype.itemsize

    # Loop-invariant weight prep, once, outside the kernels.  nn.Linear weights
    # are [out, in]; pre-transpose + pack so the kernels never transpose, and
    # pre-cast to the input dtype so the MXU sees bf16 operands when x is bf16.
    w_qkv = jnp.concatenate([params["wq"].T, params["wk"].T, params["wv"].T],
                            axis=1).astype(dtype)               # (C, 3C)
    w_o = params["wo"].T.astype(dtype)                          # (C, C)
    b_o = params["bo"].reshape(1, C).astype(dtype)              # (1, C)

    # ------------------- Kernel 1: packed QKV projection --------------------
    tl = _pick_tile(L, q_tile)
    n_l = L // tl
    proj_est = (2 * (tl * C + 3 * tl * C) * isz        # double-buffered x + outputs
                + 2 * C * 3 * C * isz                  # weights (worst case 2 bufs)
                + 4 * tl * 3 * C)                      # f32 qkv transient
    q, k, v = pl.pallas_call(
        functools.partial(_qkv_proj_kernel, scale=scale),
        out_shape=(jax.ShapeDtypeStruct((B, L, C), dtype),) * 3,
        grid=(B, n_l),
        in_specs=[
            pl.BlockSpec((1, tl, C), lambda b, i: (b, i, 0)),
            _resident_spec((C, 3 * C)),
        ],
        out_specs=[pl.BlockSpec((1, tl, C), lambda b, i: (b, i, 0))] * 3,
        compiler_params=pltpu.CompilerParams(
            dimension_semantics=("parallel", "parallel"),
            vmem_limit_bytes=_vmem_limit(proj_est)),
        cost_estimate=pl.CostEstimate(
            flops=2 * B * L * C * 3 * C,
            transcendentals=0,
            bytes_accessed=isz * (B * L * C + C * 3 * C + 3 * B * L * C)),
    )(x, w_qkv)

    # --------- Kernel 2: flash attention + fused output projection ----------
    tq = _pick_tile(L, q_tile)
    tk = _pick_tile(L, kv_tile)
    n_q = L // tq
    n_kv = L // tk

    lane = 128
    attn_est = (2 * (2 * tq * C + 2 * tk * C) * isz              # dbl-buffered q,k,v,o
                + 2 * (C * C + C) * isz                          # weights (worst case)
                + (2 * num_heads * tq * lane
                   + num_heads * tq * max(D, lane)) * 4          # m/l/acc scratch (padded)
                + 4 * tq * tk * 4)                               # score transients (f32)

    out = pl.pallas_call(
        functools.partial(_flash_attn_proj_kernel, num_heads=num_heads),
        out_shape=jax.ShapeDtypeStruct((B, L, C), dtype),
        grid=(B, n_q, n_kv),
        in_specs=[
            pl.BlockSpec((1, tq, C), lambda b, qi, ki: (b, qi, 0)),
            pl.BlockSpec((1, tk, C), lambda b, qi, ki: (b, ki, 0)),
            pl.BlockSpec((1, tk, C), lambda b, qi, ki: (b, ki, 0)),
            _resident_spec((C, C)),
            _resident_spec((1, C)),
        ],
        out_specs=pl.BlockSpec((1, tq, C), lambda b, qi, ki: (b, qi, 0)),
        scratch_shapes=[
            pltpu.VMEM((num_heads, tq, 1), jnp.float32),   # running max  m
            pltpu.VMEM((num_heads, tq, 1), jnp.float32),   # running sum  l
            pltpu.VMEM((num_heads, tq, D), jnp.float32),   # running acc  (p @ v)
        ],
        compiler_params=pltpu.CompilerParams(
            dimension_semantics=("parallel", "parallel", "arbitrary"),
            vmem_limit_bytes=_vmem_limit(attn_est)),
        cost_estimate=pl.CostEstimate(
            flops=4 * B * L * L * C + 2 * B * L * C * C,
            transcendentals=B * num_heads * L * L,
            bytes_accessed=isz * (B * L * C * (2 + 2 * n_q) + C * C + C)),
    )(q, k, v, w_o, b_o)
    return out


# ---------------------------------------------------------------------------
# Pure-JAX reference (mirrors the PyTorch 'math' attention path)
# ---------------------------------------------------------------------------

def reference_forward(x, params, num_heads):
    B, L, C = x.shape
    D = C // num_heads
    scale = D ** (-0.5)
    q = x @ params["wq"].T
    k = x @ params["wk"].T
    v = x @ params["wv"].T

    def split_heads(t):
        return t.reshape(B, L, num_heads, D).transpose(0, 2, 1, 3)

    q, k, v = split_heads(q), split_heads(k), split_heads(v)
    s = jnp.einsum("bhld,bhmd->bhlm", q, k) * scale
    p = jax.nn.softmax(s, axis=-1)
    o = jnp.einsum("bhlm,bhmd->bhld", p, v)
    o = o.transpose(0, 2, 1, 3).reshape(B, L, C)
    return o @ params["wo"].T + params["bo"]


# ---------------------------------------------------------------------------
# Main
# ---------------------------------------------------------------------------

if __name__ == "__main__":
    B, L, C = 2, 16, 32
    num_heads = 4  # head_dim = 8

    key = jax.random.PRNGKey(0)
    kx, kq, kk, kv, ko, kb = jax.random.split(key, 6)

    x = jax.random.normal(kx, (B, L, C), dtype=jnp.float32)

    # Deterministic synthetic parameters (nn.Linear weight layout: [out, in]).
    params = {
        "wq": 0.05 * jax.random.normal(kq, (C, C), dtype=jnp.float32),
        "wk": 0.05 * jax.random.normal(kk, (C, C), dtype=jnp.float32),
        "wv": 0.05 * jax.random.normal(kv, (C, C), dtype=jnp.float32),
        "wo": 0.05 * jax.random.normal(ko, (C, C), dtype=jnp.float32),
        "bo": 0.01 * jax.random.normal(kb, (C,), dtype=jnp.float32),
    }

    out = attention_forward(x, params, num_heads)
    out = jax.block_until_ready(out)

    ref = reference_forward(x, params, num_heads)
    assert out.shape == (B, L, C)
    # approx reciprocal in the softmax introduces a small (<1e-3) deviation.
    assert jnp.allclose(out, ref, atol=2e-3, rtol=2e-3), "mismatch vs reference"

    print("KERNEL_OK")
</pallas_src>

<mosaic_0001>
module attributes {stable_mosaic.version = 11 : i64} {
  func.func @_qkv_proj_kernel(%arg0: i32, %arg1: i32, %arg2: memref<1x16x32xf32, #tpu.memory_space<vmem>>, %arg3: memref<32x96xf32, #tpu.memory_space<vmem>>, %arg4: memref<1x16x32xf32, #tpu.memory_space<vmem>>, %arg5: memref<1x16x32xf32, #tpu.memory_space<vmem>>, %arg6: memref<1x16x32xf32, #tpu.memory_space<vmem>>) attributes {dimension_semantics = [#tpu.dimension_semantics<parallel>, #tpu.dimension_semantics<parallel>], iteration_bounds = array<i64: 2, 1>, scalar_prefetch = 0 : i64, scratch_operands = 0 : i64, tpu.core_type = #tpu.core_type<tc>, window_params = [{transform_indices = @transform_0, window_bounds = array<i64: 1, 16, 32>}, {pipeline_mode = #tpu.pipeline_mode<synchronous>, transform_indices = @transform_1, window_bounds = array<i64: 32, 96>}, {transform_indices = @transform_2, window_bounds = array<i64: 1, 16, 32>}, {transform_indices = @transform_3, window_bounds = array<i64: 1, 16, 32>}, {transform_indices = @transform_4, window_bounds = array<i64: 1, 16, 32>}]} {
    %c0 = arith.constant 0 : index
    %c0_0 = arith.constant 0 : index
    %c0_1 = arith.constant 0 : index
    %0 = vector.load %arg2[%c0, %c0_0, %c0_1] : memref<1x16x32xf32, #tpu.memory_space<vmem>>, vector<1x16x32xf32>
    %1 = vector.shape_cast %0 : vector<1x16x32xf32> to vector<16x32xf32>
    %c0_2 = arith.constant 0 : index
    %c0_3 = arith.constant 0 : index
    %2 = vector.load %arg3[%c0_2, %c0_3] : memref<32x96xf32, #tpu.memory_space<vmem>>, vector<32x96xf32>
    %cst = arith.constant dense<0.000000e+00> : vector<16x96xf32>
    %3 = tpu.matmul %1, %2, %cst {dimension_numbers = #tpu.dot_dimension_numbers<[1], [0], [0], [1], [0, 0, 1, 1], [], []>} : vector<16x32xf32>, vector<32x96xf32>, vector<16x96xf32> -> vector<16x96xf32>
    %4 = vector.extract_strided_slice %3 {offsets = [0, 0], sizes = [16, 32], strides = [1, 1]} : vector<16x96xf32> to vector<16x32xf32>
    %cst_4 = arith.constant 0.353553385 : f32
    %5 = vector.broadcast %cst_4 : f32 to vector<16x32xf32>
    %6 = arith.mulf %4, %5 : vector<16x32xf32>
    %c0_5 = arith.constant 0 : index
    %c0_6 = arith.constant 0 : index
    %c0_7 = arith.constant 0 : index
    %7 = vector.load %arg4[%c0_5, %c0_6, %c0_7] : memref<1x16x32xf32, #tpu.memory_space<vmem>>, vector<1x16x32xf32>
    %8 = vector.shape_cast %7 : vector<1x16x32xf32> to vector<16x32xf32>
    %9 = vector.shape_cast %6 : vector<16x32xf32> to vector<1x16x32xf32>
    tpu.vector_store %arg4[%c0_5, %c0_6, %c0_7], %9 {strides = array<i32>} : memref<1x16x32xf32, #tpu.memory_space<vmem>>, vector<1x16x32xf32>,
    %10 = vector.extract_strided_slice %3 {offsets = [0, 32], sizes = [16, 32], strides = [1, 1]} : vector<16x96xf32> to vector<16x32xf32>
    %c0_8 = arith.constant 0 : index
    %c0_9 = arith.constant 0 : index
    %c0_10 = arith.constant 0 : index
    %11 = vector.load %arg5[%c0_8, %c0_9, %c0_10] : memref<1x16x32xf32, #tpu.memory_space<vmem>>, vector<1x16x32xf32>
    %12 = vector.shape_cast %11 : vector<1x16x32xf32> to vector<16x32xf32>
    %13 = vector.shape_cast %10 : vector<16x32xf32> to vector<1x16x32xf32>
    tpu.vector_store %arg5[%c0_8, %c0_9, %c0_10], %13 {strides = array<i32>} : memref<1x16x32xf32, #tpu.memory_space<vmem>>, vector<1x16x32xf32>,
    %14 = vector.extract_strided_slice %3 {offsets = [0, 64], sizes = [16, 32], strides = [1, 1]} : vector<16x96xf32> to vector<16x32xf32>
    %c0_11 = arith.constant 0 : index
    %c0_12 = arith.constant 0 : index
    %c0_13 = arith.constant 0 : index
    %15 = vector.load %arg6[%c0_11, %c0_12, %c0_13] : memref<1x16x32xf32, #tpu.memory_space<vmem>>, vector<1x16x32xf32>
    %16 = vector.shape_cast %15 : vector<1x16x32xf32> to vector<16x32xf32>
    %17 = vector.shape_cast %14 : vector<16x32xf32> to vector<1x16x32xf32>
    tpu.vector_store %arg6[%c0_11, %c0_12, %c0_13], %17 {strides = array<i32>} : memref<1x16x32xf32, #tpu.memory_space<vmem>>, vector<1x16x32xf32>,
    return
  }
  func.func @transform_0(%arg0: i32, %arg1: i32) -> (i32, i32, i32) {
    %c0_i32 = arith.constant 0 : i32
    %c0_i32_0 = arith.constant 0 : i32
    return %arg0, %arg1, %c0_i32 : i32, i32, i32
  }
  func.func @transform_1(%arg0: i32, %arg1: i32) -> (i32, i32) {
    %c0_i32 = arith.constant 0 : i32
    %c0_i32_0 = arith.constant 0 : i32
    %c0_i32_1 = arith.constant 0 : i32
    return %c0_i32, %c0_i32_0 : i32, i32
  }
  func.func @transform_2(%arg0: i32, %arg1: i32) -> (i32, i32, i32) {
    %c0_i32 = arith.constant 0 : i32
    %c0_i32_0 = arith.constant 0 : i32
    return %arg0, %arg1, %c0_i32 : i32, i32, i32
  }
  func.func @transform_3(%arg0: i32, %arg1: i32) -> (i32, i32, i32) {
    %c0_i32 = arith.constant 0 : i32
    %c0_i32_0 = arith.constant 0 : i32
    return %arg0, %arg1, %c0_i32 : i32, i32, i32
  }
  func.func @transform_4(%arg0: i32, %arg1: i32) -> (i32, i32, i32) {
    %c0_i32 = arith.constant 0 : i32
    %c0_i32_0 = arith.constant 0 : i32
    return %arg0, %arg1, %c0_i32 : i32, i32, i32
  }
}

</mosaic_0001>

<llo_original>
// kernel: tpu_custom_call.1
$region0: #{tpu_custom_call.1}
  #allocation0 [shape = 'u32[]', space=smem, size = 0x4, offset = 0x4, fixed_abs, tag = 'smem constant byte address 0x4 - core index']
  #allocation1 [shape = 'u32[144,128]{1,0:T(1,128)}', space=vmem, size = 0x12000, scoped, tag = 'internal scratch']
  %s0 = inlined_call_operand.hbm [shape: f32[2,16,32], index: 0, kind: input, shape index: {}]
  %s1 = inlined_call_operand.hbm [shape: f32[32,96], index: 1, kind: input, shape index: {}]
  %s2 = inlined_call_operand.hbm [shape: f32[2,16,32], index: 2, kind: output, shape index: {0}]
  %s3 = inlined_call_operand.hbm [shape: f32[2,16,32], index: 3, kind: output, shape index: {1}]
  %s4 = inlined_call_operand.hbm [shape: f32[2,16,32], index: 4, kind: output, shape index: {2}]
  %5 = xla_tuple %s2, %s3, %s4
  %s6 = sld [smem:[#allocation0]]
  $region65: #{tpu_custom_call.1} parent=0
    _
  %s8 = ssub.s32 1, %s6
  %s9 = scalar_select 0, %s8, %s6
  $region1: #{tpu_custom_call.1} parent=0
    #allocation2 [shape = 'u8[16384]{0}', space=vmem, size = 0x4000, scoped, tag = 'input window, operand 0']
    #allocation3 [shape = 's32[2]{0}', space=sflag, size = 0x8, scoped, tag = 'scoped memory for tpu_custom_call.1']
    #allocation4 [shape = 's32[2]{0}', space=sflag, size = 0x8, scoped, tag = 'scoped memory for tpu_custom_call.1']
    #allocation5 [shape = 'u8[16384]{0}', space=vmem, size = 0x4000, scoped, tag = 'input window, operand 1, single buffered']
    #allocation6 [shape = 's32[1]{0}', space=sflag, size = 0x4, scoped, tag = 'scoped memory for tpu_custom_call.1']
    #allocation7 [shape = 'u8[16384]{0}', space=vmem, size = 0x4000, scoped, tag = 'output window, operand 0']
    #allocation8 [shape = 'u8[16384]{0}', space=vmem, size = 0x4000, scoped, tag = 'output window, operand 1']
    #allocation9 [shape = 's32[2]{0}', space=sflag, size = 0x8, scoped, tag = 'scoped memory for tpu_custom_call.1']
    #allocation10 [shape = 'u8[16384]{0}', space=vmem, size = 0x4000, scoped, tag = 'output window, operand 2']
    %10 = vsyncpa [#allocation3], 0
    %s11 = scalar_lea.sflag [#allocation3], 1
    %12 = vsyncpa %s11, 0
    %13 = vsyncpa [#allocation6], 0
    %14 = vsyncpa [#allocation4], 0
    %s15 = scalar_lea.sflag [#allocation4], 1
    %16 = vsyncpa %s15, 0
    %17 = vsyncpa [#allocation9], 0
    %s18 = scalar_lea.sflag [#allocation9], 1
    %19 = vsyncpa %s18, 0
    loop: start=0, step=1, limit=4
    $region2: #{tpu_custom_call.1} parent=1 // loop_pre_header
      _
    $region3: #{tpu_custom_call.1} parent=1 // loop_header
      %s21 = sphi 0, %s25
      %p22 = scmp.ge.s32.totalorder %s21, 4
      %s28 = sphi 0, %s40
      %s29 = sphi 0, %s36
      %s30 = sphi 0, %s28
      %s31 = sphi 0, %s29
      %s32 = sphi 0, %s30
      %s33 = sphi 0, %s31
      %s45 = sphi 0, %s47
      %s48 = sphi 0, %s45
      %s49 = sphi 0, %s48
      %s65 = sphi 0, %s49
      %s69 = sphi 0, %s69
      %s71 = sphi 0, %s69
      %s72 = sphi 0, %s71
      %s86 = sphi 0, %s72
      %s94 = sphi 0, %s96
      %s97 = sphi 0, %s94
      %s98 = sphi 0, %s97
      %s114 = sphi 0, %s98
      %s122 = sphi 0, %s124
      %s125 = sphi 0, %s122
      %s126 = sphi 0, %s125
      %s142 = sphi 0, %s126
      %s150 = sphi 0, %s152
      %s153 = sphi 0, %s150
      %s154 = sphi 0, %s153
      %s170 = sphi 0, %s154
    $region4: #{tpu_custom_call.1} parent=1 // loop_header_branch
      %24 = sbr.rel (%p22) target = $region8
    $region5: #{tpu_custom_call.1} parent=1 // loop_body
      %s26 = ssub.s32 %s21, 1
      %s27 = ssub.s32 %s21, 2
      %s34 = sadd.s32 1, %s29
      %p35 = scmp.ge.s32.totalorder %s34, 1
      %s36 = scalar_select %p35, 0, %s34
      %s37 = sadd.s32 1, %s28
      %s38 = scalar_select %p35, %s37, %s28
      %p39 = scmp.ge.s32.totalorder %s38, 2
      %s40 = scalar_select %p39, 0, %s38
      %s41 = ssub.s32 %s28, %s40
      %s42 = ssub.s32 %s29, %s36
      %s43 = sor.u32 %s41, %s42
      %p44 = scmp.eq.s32.totalorder %s43, 0
      %s46 = sadd.s32 %s45, 1
      %s47 = scalar_select %p44, %s45, %s46
      %p50 = pneg %p44
      %p51 = scmp.eq.s32.totalorder %s21, 1
      %p52 = por %p50, %p51
      %p53 = scmp.ne.s32.totalorder %s45, %s48
      %p54 = scmp.eq.s32.totalorder %s21, 0
      %p55 = por %p53, %p54
      %p56 = scmp.ne.s32.totalorder %s45, %s48
      %p57 = scmp.eq.s32.totalorder %s26, 1
      %p58 = por %p56, %p57
      %p59 = scmp.ne.s32.totalorder %s48, %s49
      %p60 = scmp.eq.s32.totalorder %s26, 0
      %p61 = por %p59, %p60
      %p62 = scmp.ne.s32.totalorder %s48, %s49
      %p63 = scmp.eq.s32.totalorder %s27, 1
      %p64 = por %p62, %p63
      %p66 = scmp.ne.s32.totalorder %s49, %s65
      %p67 = scmp.eq.s32.totalorder %s27, 0
      %p68 = por %p66, %p67
      %s70 = sadd.s32 %s69, 1
      %p73 = scmp.eq.s32.totalorder %s21, 1
      %p74 = scmp.ne.s32.totalorder %s69, %s71
      %p75 = scmp.eq.s32.totalorder %s21, 0
      %p76 = por %p74, %p75
      %p77 = scmp.ne.s32.totalorder %s69, %s71
      %p78 = scmp.eq.s32.totalorder %s26, 1
      %p79 = por %p77, %p78
      %p80 = scmp.ne.s32.totalorder %s71, %s72
      %p81 = scmp.eq.s32.totalorder %s26, 0
      %p82 = por %p80, %p81
      %p83 = scmp.ne.s32.totalorder %s71, %s72
      %p84 = scmp.eq.s32.totalorder %s27, 1
      %p85 = por %p83, %p84
      %p87 = scmp.ne.s32.totalorder %s72, %s86
      %p88 = scmp.eq.s32.totalorder %s27, 0
      %p89 = por %p87, %p88
      %s90 = ssub.s32 %s28, %s40
      %s91 = ssub.s32 %s29, %s36
      %s92 = sor.u32 %s90, %s91
      %p93 = scmp.eq.s32.totalorder %s92, 0
      %s95 = sadd.s32 %s94, 1
      %s96 = scalar_select %p93, %s94, %s95
      %p99 = pneg %p93
      %p100 = scmp.eq.s32.totalorder %s21, 1
      %p101 = por %p99, %p100
      %p102 = scmp.ne.s32.totalorder %s94, %s97
      %p103 = scmp.eq.s32.totalorder %s21, 0
      %p104 = por %p102, %p103
      %p105 = scmp.ne.s32.totalorder %s94, %s97
      %p106 = scmp.eq.s32.totalorder %s26, 1
      %p107 = por %p105, %p106
      %p108 = scmp.ne.s32.totalorder %s97, %s98
      %p109 = scmp.eq.s32.totalorder %s26, 0
      %p110 = por %p108, %p109
      %p111 = scmp.ne.s32.totalorder %s97, %s98
      %p112 = scmp.eq.s32.totalorder %s27, 1
      %p113 = por %p111, %p112
      %p115 = scmp.ne.s32.totalorder %s98, %s114
      %p116 = scmp.eq.s32.totalorder %s27, 0
      %p117 = por %p115, %p116
      %s118 = ssub.s32 %s28, %s40
      %s119 = ssub.s32 %s29, %s36
      %s120 = sor.u32 %s118, %s119
      %p121 = scmp.eq.s32.totalorder %s120, 0
      %s123 = sadd.s32 %s122, 1
      %s124 = scalar_select %p121, %s122, %s123
      %p127 = pneg %p121
      %p128 = scmp.eq.s32.totalorder %s21, 1
      %p129 = por %p127, %p128
      %p130 = scmp.ne.s32.totalorder %s122, %s125
      %p131 = scmp.eq.s32.totalorder %s21, 0
      %p132 = por %p130, %p131
      %p133 = scmp.ne.s32.totalorder %s122, %s125
      %p134 = scmp.eq.s32.totalorder %s26, 1
      %p135 = por %p133, %p134
      %p136 = scmp.ne.s32.totalorder %s125, %s126
      %p137 = scmp.eq.s32.totalorder %s26, 0
      %p138 = por %p136, %p137
      %p139 = scmp.ne.s32.totalorder %s125, %s126
      %p140 = scmp.eq.s32.totalorder %s27, 1
      %p141 = por %p139, %p140
      %p143 = scmp.ne.s32.totalorder %s126, %s142
      %p144 = scmp.eq.s32.totalorder %s27, 0
      %p145 = por %p143, %p144
      %s146 = ssub.s32 %s28, %s40
      %s147 = ssub.s32 %s29, %s36
      %s148 = sor.u32 %s146, %s147
      %p149 = scmp.eq.s32.totalorder %s148, 0
      %s151 = sadd.s32 %s150, 1
      %s152 = scalar_select %p149, %s150, %s151
      %p155 = pneg %p149
      %p156 = scmp.eq.s32.totalorder %s21, 1
      %p157 = por %p155, %p156
      %p158 = scmp.ne.s32.totalorder %s150, %s153
      %p159 = scmp.eq.s32.totalorder %s21, 0
      %p160 = por %p158, %p159
      %p161 = scmp.ne.s32.totalorder %s150, %s153
      %p162 = scmp.eq.s32.totalorder %s26, 1
      %p163 = por %p161, %p162
      %p164 = scmp.ne.s32.totalorder %s153, %s154
      %p165 = scmp.eq.s32.totalorder %s26, 0
      %p166 = por %p164, %p165
      %p167 = scmp.ne.s32.totalorder %s153, %s154
      %p168 = scmp.eq.s32.totalorder %s27, 1
      %p169 = por %p167, %p168
      %p171 = scmp.ne.s32.totalorder %s154, %s170
      %p172 = scmp.eq.s32.totalorder %s27, 0
      %p173 = por %p171, %p172
      %p174 = scmp.le.s32.totalorder 1, %s21
      %p175 = scmp.lt.s32.totalorder %s21, 3
      %p176 = pnand %p174, %p175
      %p177 = pneg %p176
      // Predicated region
      $region9: #{tpu_custom_call.1} parent=5 // pred_check
        _
      $region10: #{tpu_custom_call.1} parent=5 // pred_check_branch
        %179 = sbr.rel (%p176) target = $region12
      $region11: #{tpu_custom_call.1} parent=5 // pred_region
        %s180 = ssub.s32 %s21, 1
        // Predicated region
        $region13: #{tpu_custom_call.1} parent=11 // pred_check
          %p181 = pneg %p82
        $region14: #{tpu_custom_call.1} parent=11 // pred_check_branch
          %183 = sbr.rel (%p181) target = $region16
        $region15: #{tpu_custom_call.1} parent=11 // pred_region
          %s185 = ssub.s32 512, 512
          %186 = vsyncadd [#allocation6], %s185
          %s187 = sshll.u32 [#allocation5], 4
          %s188 = int_to_ptr.vmem [resolvable:$true] %s187
          %193 = dma.hbm_to_vmem [thread:$0]  %s1, 512, %s188, [#allocation6], 128, 128, 8
        $region16: #{tpu_custom_call.1} parent=11 // pred_fallthru
          _
      $region12: #{tpu_custom_call.1} parent=5 // pred_fallthru
        _
      %p194 = scmp.lt.s32.totalorder %s21, 2
      // Predicated region
      $region17: #{tpu_custom_call.1} parent=5 // pred_check
        %p195 = pneg %p194
      $region18: #{tpu_custom_call.1} parent=5 // pred_check_branch
        %197 = sbr.rel (%p195) target = $region20
      $region19: #{tpu_custom_call.1} parent=5 // pred_region
        // Predicated region
        $region21: #{tpu_custom_call.1} parent=19 // pred_check
          %p198 = pneg %p55
        $region22: #{tpu_custom_call.1} parent=19 // pred_check_branch
          %200 = sbr.rel (%p198) target = $region24
        $region23: #{tpu_custom_call.1} parent=19 // pred_region
          %s201 = sand.u32 %s45, 1
          %s202 = scalar_lea.sflag [#allocation3], %s201
          %s203 = sand.u32 %s45, 1
          %s204 = smul.addr %s203, 16
          %s205 = scalar_lea.vmem [#allocation2], %s204
          %s206 = smul.u32 2, %s29
          %s208 = ssub.s32 256, 256
          %209 = vsyncadd %s202, %s208
          %s210 = smul.addr %s28, 2
          %s211 = sadd.s32 %s206, %s210
          %s212 = smul.addr %s211, 128
          %s213 = scalar_lea.hbm %s0, %s212
          %s214 = sshll.u32 %s205, 4
          %s215 = int_to_ptr.vmem [resolvable:$true] %s214
          %220 = dma.hbm_to_vmem [thread:$0]  %s213, 256, %s215, %s202, 128, 128, 8
        $region24: #{tpu_custom_call.1} parent=19 // pred_fallthru
          _
      $region20: #{tpu_custom_call.1} parent=5 // pred_fallthru
        _
      %p221 = scmp.le.s32.totalorder 1, %s21
      %p222 = scmp.lt.s32.totalorder %s21, 3
      %p223 = pnand %p221, %p222
      %p224 = pneg %p223
      // Predicated region
      $region25: #{tpu_custom_call.1} parent=5 // pred_check
        _
      $region26: #{tpu_custom_call.1} parent=5 // pred_check_branch
        %226 = sbr.rel (%p223) target = $region28
      $region27: #{tpu_custom_call.1} parent=5 // pred_region
        %s227 = ssub.s32 %s21, 1
        %s228 = sand.u32 %s48, 1
        %s229 = scalar_lea.sflag [#allocation3], %s228
        %s230 = sand.u32 %s48, 1
        %s231 = smul.addr %s230, 16
        %s232 = scalar_lea.vmem [#allocation2], %s231
        // Predicated region
        $region29: #{tpu_custom_call.1} parent=27 // pred_check
          %p233 = pneg %p61
        $region30: #{tpu_custom_call.1} parent=27 // pred_check_branch
          %235 = sbr.rel (%p233) target = $region32
        $region31: #{tpu_custom_call.1} parent=27 // pred_region
          %236 = dma.done %s229, 256
        $region32: #{tpu_custom_call.1} parent=27 // pred_fallthru
          _
        // Predicated region
        $region33: #{tpu_custom_call.1} parent=27 // pred_check
          %p237 = pneg %p82
        $region34: #{tpu_custom_call.1} parent=27 // pred_check_branch
          %239 = sbr.rel (%p237) target = $region36
        $region35: #{tpu_custom_call.1} parent=27 // pred_region
          %240 = dma.done [#allocation6], 512
        $region36: #{tpu_custom_call.1} parent=27 // pred_fallthru
          _
        %s241 = sand.u32 %s48, 1
        %s242 = scalar_lea.sflag [#allocation3], %s241
        %s243 = sand.u32 %s48, 1
        %s244 = smul.addr %s243, 16
        %s245 = scalar_lea.vmem [#allocation2], %s244
        %p246 = pneg %p61
        %p247 = pneg %p58
        %p248 = pneg %p82
        %p249 = pneg %p79
        %p250 = pneg %p110
        %p251 = pneg %p107
        %s252 = sand.u32 %s97, 1
        %s253 = scalar_lea.sflag [#allocation4], %s252
        %s254 = sand.u32 %s97, 1
        %s255 = smul.addr %s254, 16
        %s256 = scalar_lea.vmem [#allocation7], %s255
        %p257 = pneg %p138
        %p258 = pneg %p135
        %s259 = sand.u32 %s26, 1
        %s260 = scalar_lea.sflag [#allocation9], %s259
        %s261 = sand.u32 %s125, 1
        %s262 = smul.addr %s261, 16
        %s263 = scalar_lea.vmem [#allocation8], %s262
        %p264 = pneg %p166
        %p265 = pneg %p163
        %s266 = sand.u32 %s26, 1
        %s267 = scalar_lea.sflag [#allocation9], %s266
        %s268 = sand.u32 %s153, 1
        %s269 = smul.addr %s268, 16
        %s270 = scalar_lea.vmem [#allocation10], %s269
        %s271 = smul.u32 2, %s31
        %s272 = smul.u32 2, %s31
        %s273 = smul.u32 2, %s31
        %s274 = smul.u32 2, %s31
        %v275 = vld [vmem:[%s232] sm:$0xff]
        %v276 = vld [vmem:[%s232 + $0x8] sm:$0xff]
        %v277 = vld [vmem:[#allocation5] sm:$0xff]
        %v278 = vld [vmem:[#allocation5 + $0x8] sm:$0xff]
        %v279 = vld [vmem:[#allocation5 + $0x10] sm:$0xff]
        %v280 = vld [vmem:[#allocation5 + $0x18] sm:$0xff]
        %vm281 = vcmask 261120
        %v283 = vsel %vm281, %v275, 0
        %v286 = vsel %vm281, %v276, 0
        %288 = vmatprep.subr.mxu0 0.0
        %289 = vmatpush1.msra.mxu0 0.0
        %290 = vmatprep.subr.mxu0 0.0
        %291 = vmatpush1.msra.mxu0 0.0
        %292 = vmatprep.subr.mxu0 0.0
        %293 = vmatpush1.msra.mxu0 0.0
        %294 = vmatprep.subr.mxu0 0.0
        %295 = vmatpush1.msra.mxu0 0.0
        %296 = vmatprep.subr.mxu0 0.0
        %297 = vmatpush1.msra.mxu0 0.0
        %298 = vmatprep.subr.mxu0 0.0
        %299 = vmatpush1.msra.mxu0 0.0
        %300 = vmatprep.subr.mxu0 0.0
        %301 = vmatpush1.msra.mxu0 0.0
        %302 = vmatprep.subr.mxu0 0.0
        %303 = vmatpush1.msra.mxu0 0.0
        %304 = vmatprep.subr.mxu0 0.0
        %305 = vmatpush1.msra.mxu0 0.0
        %306 = vmatprep.subr.mxu0 0.0
        %307 = vmatpush1.msra.mxu0 0.0
        %308 = vmatprep.subr.mxu0 0.0
        %309 = vmatpush1.msra.mxu0 0.0
        %310 = vmatprep.subr.mxu0 0.0
        %311 = vmatpush1.msra.mxu0 0.0
        %312 = vmatprep.subr.mxu0 0.0
        %313 = vmatpush1.msra.mxu0 %v280
        %314 = vmatprep.subr.mxu0 0.0
        %315 = vmatpush1.msra.mxu0 %v279
        %316 = vmatprep.subr.mxu0 0.0
        %317 = vmatpush1.msra.mxu0 %v278
        %318 = vmatprep.subr.mxu0 0.0
        %319 = vmatpush1.msra.mxu0 %v277
        %320 = vmatprep.subr.mxu0 0.0
        %321 = vmatpush2.msra.mxu0 0.0
        %322 = vmatprep.subr.mxu0 0.0
        %323 = vmatpush2.msra.mxu0 0.0
        %324 = vmatprep.subr.mxu0 0.0
        %325 = vmatpush2.msra.mxu0 0.0
        %326 = vmatprep.subr.mxu0 0.0
        %327 = vmatpush2.msra.mxu0 0.0
        %328 = vmatprep.subr.mxu0 0.0
        %329 = vmatpush2.msra.mxu0 0.0
        %330 = vmatprep.subr.mxu0 0.0
        %331 = vmatpush2.msra.mxu0 0.0
        %332 = vmatprep.subr.mxu0 0.0
        %333 = vmatpush2.msra.mxu0 0.0
        %334 = vmatprep.subr.mxu0 0.0
        %335 = vmatpush2.msra.mxu0 0.0
        %336 = vmatprep.subr.mxu0 0.0
        %337 = vmatpush2.msra.mxu0 0.0
        %338 = vmatprep.subr.mxu0 0.0
        %339 = vmatpush2.msra.mxu0 0.0
        %340 = vmatprep.subr.mxu0 0.0
        %341 = vmatpush2.msra.mxu0 0.0
        %342 = vmatprep.subr.mxu0 0.0
        %343 = vmatpush2.msra.mxu0 0.0
        %344 = vmatprep.subr.mxu0 0.0
        %345 = vmatpush2.msra.mxu0 0.0
        %346 = vmatprep.subr.mxu0 0.0
        %347 = vmatpush2.msra.mxu0 0.0
        %348 = vmatprep.subr.mxu0 0.0
        %349 = vmatpush2.msra.mxu0 0.0
        %350 = vmatprep.subr.mxu0 0.0
        %351 = vmatpush2.msra.mxu0 0.0
        %352 = vmatprep.mubr.f32.mxu0 0.0
        %353 = vmatmul.mubr.f32.gmra.mxu0 %v283
        %v354 = vpop.f32.mrf.mxu0
        %v355 = vadd.f32 0.0, %v354
        %v356 = vpop.f32.mrf.mxu0
        %357 = vmatprep.mubr.f32.mxu0 0.0
        %358 = vmatmul.mubr.f32.gmra.mxu0 %v286
        %v359 = vpop.f32.mrf.mxu0
        %v360 = vadd.f32 0.0, %v359
        %v361 = vpop.f32.mrf.mxu0
        %362 = vdwg.mxu0
        %v363 = vmul.f32 %v355, 0.35355338
        %v364 = vmul.f32 %v360, 0.35355338
        %365 = vst.msk [vmem:[%s256] sm:$0xff] %vm281, %v363
        %366 = vst.msk [vmem:[%s256 + $0x8] sm:$0xff] %vm281, %v364
        %369 = vrot.lane.b32.xlu0 %v355, 96
        %v370 = vpop.permute.xlu0 %369
        %371 = vrot.lane.b32.xlu0 %v360, 96
        %v372 = vpop.permute.xlu0 %371
        %375 = vst.msk [vmem:[%s263] sm:$0xff] %vm281, %v370
        %376 = vst.msk [vmem:[%s263 + $0x8] sm:$0xff] %vm281, %v372
        %377 = vrot.lane.b32.xlu0 %v355, 64
        %v378 = vpop.permute.xlu0 %377
        %379 = vrot.lane.b32.xlu0 %v360, 64
        %v380 = vpop.permute.xlu0 %379
        %383 = vst.msk [vmem:[%s270] sm:$0xff] %vm281, %v378
        %384 = vst.msk [vmem:[%s270 + $0x8] sm:$0xff] %vm281, %v380
        %s385 = sand.u32 %s97, 1
        %s386 = scalar_lea.sflag [#allocation4], %s385
        %s387 = sand.u32 %s97, 1
        %s388 = smul.addr %s387, 16
        %s389 = scalar_lea.vmem [#allocation7], %s388
        %s390 = sand.u32 %s26, 1
        %s391 = scalar_lea.sflag [#allocation9], %s390
        %s392 = sand.u32 %s125, 1
        %s393 = smul.addr %s392, 16
        %s394 = scalar_lea.vmem [#allocation8], %s393
        %s395 = sand.u32 %s26, 1
        %s396 = scalar_lea.sflag [#allocation9], %s395
        %s397 = sand.u32 %s153, 1
        %s398 = smul.addr %s397, 16
        %s399 = scalar_lea.vmem [#allocation10], %s398
        // Predicated region
        $region37: #{tpu_custom_call.1} parent=27 // pred_check
          %p400 = pneg %p107
        $region38: #{tpu_custom_call.1} parent=27 // pred_check_branch
          %402 = sbr.rel (%p400) target = $region40
        $region39: #{tpu_custom_call.1} parent=27 // pred_region
          %s403 = smul.u32 2, %s31
          %s405 = ssub.s32 256, 256
          %406 = vsyncadd %s386, %s405
          %s407 = smul.addr %s30, 2
          %s408 = sadd.s32 %s403, %s407
          %s409 = smul.addr %s408, 128
          %s410 = scalar_lea.hbm %s2, %s409
          %s411 = sshll.u32 %s389, 4
          %s412 = int_to_ptr.vmem [resolvable:$true] %s411
          %417 = dma.vmem_to_hbm [thread:$0]  %s412, 256, %s410, %s386, 128, 128, 8
        $region40: #{tpu_custom_call.1} parent=27 // pred_fallthru
          _
        // Predicated region
        $region41: #{tpu_custom_call.1} parent=27 // pred_check
          %p418 = pneg %p135
        $region42: #{tpu_custom_call.1} parent=27 // pred_check_branch
          %420 = sbr.rel (%p418) target = $region44
        $region43: #{tpu_custom_call.1} parent=27 // pred_region
          %s421 = smul.u32 2, %s31
          %s423 = ssub.s32 256, 256
          %424 = vsyncadd %s391, %s423
          %s425 = smul.addr %s30, 2
          %s426 = sadd.s32 %s421, %s425
          %s427 = smul.addr %s426, 128
          %s428 = scalar_lea.hbm %s3, %s427
          %s429 = sshll.u32 %s394, 4
          %s430 = int_to_ptr.vmem [resolvable:$true] %s429
          %435 = dma.vmem_to_hbm [thread:$0]  %s430, 256, %s428, %s391, 128, 128, 8
        $region44: #{tpu_custom_call.1} parent=27 // pred_fallthru
          _
        // Predicated region
        $region45: #{tpu_custom_call.1} parent=27 // pred_check
          %p436 = pneg %p163
        $region46: #{tpu_custom_call.1} parent=27 // pred_check_branch
          %438 = sbr.rel (%p436) target = $region48
        $region47: #{tpu_custom_call.1} parent=27 // pred_region
          %s439 = smul.u32 2, %s31
          %s441 = ssub.s32 256, 256
          %442 = vsyncadd %s396, %s441
          %s443 = smul.addr %s30, 2
          %s444 = sadd.s32 %s439, %s443
          %s445 = smul.addr %s444, 128
          %s446 = scalar_lea.hbm %s4, %s445
          %s447 = sshll.u32 %s399, 4
          %s448 = int_to_ptr.vmem [resolvable:$true] %s447
          %453 = dma.vmem_to_hbm [thread:$0]  %s448, 256, %s446, %s396, 128, 128, 8
        $region48: #{tpu_custom_call.1} parent=27 // pred_fallthru
          _
      $region28: #{tpu_custom_call.1} parent=5 // pred_fallthru
        _
      %p454 = scmp.le.s32.totalorder 2, %s21
      // Predicated region
      $region49: #{tpu_custom_call.1} parent=5 // pred_check
        %p455 = pneg %p454
      $region50: #{tpu_custom_call.1} parent=5 // pred_check_branch
        %457 = sbr.rel (%p455) target = $region52
      $region51: #{tpu_custom_call.1} parent=5 // pred_region
        %s458 = ssub.s32 %s21, 2
        // Predicated region
        $region53: #{tpu_custom_call.1} parent=51 // pred_check
          %p459 = pneg %p113
        $region54: #{tpu_custom_call.1} parent=51 // pred_check_branch
          %461 = sbr.rel (%p459) target = $region56
        $region55: #{tpu_custom_call.1} parent=51 // pred_region
          %s462 = sand.u32 %s98, 1
          %s463 = scalar_lea.sflag [#allocation4], %s462
          %s464 = sand.u32 %s98, 1
          %s465 = smul.addr %s464, 16
          %s466 = scalar_lea.vmem [#allocation7], %s465
          %467 = dma.done %s463, 256
        $region56: #{tpu_custom_call.1} parent=51 // pred_fallthru
          _
        // Predicated region
        $region57: #{tpu_custom_call.1} parent=51 // pred_check
          %p468 = pneg %p141
        $region58: #{tpu_custom_call.1} parent=51 // pred_check_branch
          %470 = sbr.rel (%p468) target = $region60
        $region59: #{tpu_custom_call.1} parent=51 // pred_region
          %s471 = sand.u32 %s27, 1
          %s472 = scalar_lea.sflag [#allocation9], %s471
          %s473 = sand.u32 %s126, 1
          %s474 = smul.addr %s473, 16
          %s475 = scalar_lea.vmem [#allocation8], %s474
          %476 = dma.done %s472, 256
        $region60: #{tpu_custom_call.1} parent=51 // pred_fallthru
          _
        // Predicated region
        $region61: #{tpu_custom_call.1} parent=51 // pred_check
          %p477 = pneg %p169
        $region62: #{tpu_custom_call.1} parent=51 // pred_check_branch
          %479 = sbr.rel (%p477) target = $region64
        $region63: #{tpu_custom_call.1} parent=51 // pred_region
          %s480 = sand.u32 %s27, 1
          %s481 = scalar_lea.sflag [#allocation9], %s480
          %s482 = sand.u32 %s154, 1
          %s483 = smul.addr %s482, 16
          %s484 = scalar_lea.vmem [#allocation10], %s483
          %485 = dma.done %s481, 256
        $region64: #{tpu_custom_call.1} parent=51 // pred_fallthru
          _
      $region52: #{tpu_custom_call.1} parent=5 // pred_fallthru
        _
    $region6: #{tpu_custom_call.1} parent=1 // loop_footer
      %s25 = sadd.s32 1, %s21
    $region7: #{tpu_custom_call.1} parent=1 // loop_footer_branch
      %20 = sbr.rel target = $region3
    $region8: #{tpu_custom_call.1} parent=1 // loop_exit
      _
    %486 = vsyncpa [#allocation3], 1
    %s487 = scalar_lea.sflag [#allocation3], 1
    %488 = vsyncpa %s487, 1
    %489 = vsyncpa [#allocation6], 1
    %490 = vsyncpa [#allocation4], 1
    %s491 = scalar_lea.sflag [#allocation4], 1
    %492 = vsyncpa %s491, 1
    %493 = vsyncpa [#allocation9], 1
    %s494 = scalar_lea.sflag [#allocation9], 1
    %495 = vsyncpa %s494, 1

</llo_original>
